<compile_context>
chip_gen: v5e
topology: v5e:2x2
jax: 0.10.0
libtpu: 0.0.40
codegen_flags: <defaults>
</compile_context>

<pallas_src>
import functools

import jax
import jax.numpy as jnp
from jax.experimental import pallas as pl
from jax.experimental.pallas import tpu as pltpu

LN_EPS = 1e-5  # PyTorch nn.LayerNorm default


def _round_up(n, m):
    return ((n + m - 1) // m) * m


def _layernorm(h, gamma, beta):
    # Two-pass variance (matches nn.LayerNorm, avoids E[h^2]-mean^2 cancellation).
    mean = jnp.mean(h, axis=-1, keepdims=True)
    c = h - mean
    var = jnp.mean(c * c, axis=-1, keepdims=True)
    return c * jax.lax.rsqrt(var + LN_EPS) * gamma + beta


def multilayer_kernel(
    x_ref,     # [TB, D]       f32
    w1_ref,    # [D, 2D]       weight dtype (f32 or bf16)
    p1_ref,    # [3, 2D]       f32 rows: (b1, gamma1, beta1)
    w2_ref,    # [TK, 4D]      weight dtype (k-streamed slab of w2)
    p2_ref,    # [3, 4D]       f32 rows: (b2, gamma2, beta2)
    w3a_ref,   # [4D, Opad]    weight dtype
    w3b_ref,   # [D,  Opad]    weight dtype
    b3_ref,    # [1,  Opad]    f32
    o_ref,     # [TB, Opad]    out dtype
    *scratch,  # () when n_k == 1, else (h1_ref [TB,2D] wdt, acc_ref [TB,4D] f32)
    n_k,
    k_tile,
):
    wdt = w1_ref.dtype

    if n_k == 1:
        # Fully-resident fused path (small/medium D).  x cast hoisted and reused
        # by both x-consuming matmuls.
        # TODO(synk): when 2D % 128 == 0, fuse the two x-consuming matmuls into a
        # single x @ [W1 | W3b] dot (one MXU weight-push sequence, better N fill).
        xw = x_ref[...].astype(wdt)

        h = jnp.dot(xw, w1_ref[...], preferred_element_type=jnp.float32)
        h = _layernorm(h + p1_ref[0:1, :], p1_ref[1:2, :], p1_ref[2:3, :])
        h = jnp.maximum(h, 0.0)

        h = jnp.dot(h.astype(wdt), w2_ref[...], preferred_element_type=jnp.float32)
        h = _layernorm(h + p2_ref[0:1, :], p2_ref[1:2, :], p2_ref[2:3, :])
        h = jnp.maximum(h, 0.0)

        out = jnp.dot(h.astype(wdt), w3a_ref[...], preferred_element_type=jnp.float32)
        out = out + jnp.dot(xw, w3b_ref[...], preferred_element_type=jnp.float32)
        o_ref[...] = (out + b3_ref[...]).astype(o_ref.dtype)
        return

    # Large-D path: w2 streamed over the "arbitrary" K-reduction grid axis.
    h1_ref, acc_ref = scratch
    k = pl.program_id(1)

    @pl.when(k == 0)
    def _():
        x = x_ref[...].astype(wdt)
        h = jnp.dot(x, w1_ref[...], preferred_element_type=jnp.float32)
        h = _layernorm(h + p1_ref[0:1, :], p1_ref[1:2, :], p1_ref[2:3, :])
        h1_ref[...] = jnp.maximum(h, 0.0).astype(h1_ref.dtype)
        acc_ref[...] = jnp.zeros_like(acc_ref)

    # linear2 partial sum: acc += h1[:, k*TK:(k+1)*TK] @ w2_slab   (f32 accumulate)
    off = pl.multiple_of(k * k_tile, k_tile)
    acc_ref[...] += jnp.dot(
        h1_ref[:, pl.ds(off, k_tile)], w2_ref[...],
        preferred_element_type=jnp.float32)

    @pl.when(k == n_k - 1)
    def _():
        h = _layernorm(acc_ref[...] + p2_ref[0:1, :], p2_ref[1:2, :], p2_ref[2:3, :])
        h = jnp.maximum(h, 0.0)
        out = jnp.dot(h.astype(wdt), w3a_ref[...], preferred_element_type=jnp.float32)
        out = out + jnp.dot(x_ref[...].astype(wdt), w3b_ref[...],
                            preferred_element_type=jnp.float32)
        o_ref[...] = (out + b3_ref[...]).astype(o_ref.dtype)


def _pick_k_tile(two_d):
    # Keep w2 fully resident for small/medium layers (single fused grid step);
    # stream it in lane-aligned (TK, 4D) slabs once 2D gets large.
    if two_d <= 512 or two_d % 128 != 0:
        return two_d
    for tk in (512, 256, 128):
        if two_d % tk == 0:
            return tk
    return two_d


def multilayer_forward(x, params, *, weight_dtype=jnp.bfloat16,
                       out_dtype=jnp.float32, batch_tile=None, k_tile=None):
    B, D = x.shape
    O = params["b3"].shape[-1]
    K2 = 2 * D

    # Lane-dense output: pad out-dim to a multiple of 128 (unmasked vector store).
    O_pad = _round_up(max(O, 128), 128)

    # Batch tiling: sublane-aligned, aim for >=4 "parallel" grid steps so both
    # v7x TensorCores engage and x/out DMA overlaps compute; 256-row tiles for
    # large batches (fills the 2x256^2 MXU on v6e/v7x, two 128-row passes on v5e).
    if batch_tile is None:
        if B >= 1024:
            batch_tile = 256
        else:
            batch_tile = max(8, min(256, _round_up(max(1, B // 4), 8)))
    TB = batch_tile
    assert TB % 8 == 0
    B_pad = _round_up(B, TB)
    x_p = x if B_pad == B else jnp.pad(x, ((0, B_pad - B), (0, 0)))

    # K tiling of linear2's reduction dim (rows of w2).
    TK = _pick_k_tile(K2) if k_tile is None else int(k_tile)
    assert K2 % TK == 0
    n_k = K2 // TK

    # Split W3 along its input axis (== concat([h, x]) @ W3); zero-pad the output
    # dimension (padded columns produce zeros, sliced off below).
    w3 = params["w3"]
    w3a, w3b = w3[: 4 * D, :], w3[4 * D :, :]
    b3 = params["b3"]
    pad_o = O_pad - O
    if pad_o:
        w3a = jnp.pad(w3a, ((0, 0), (0, pad_o)))
        w3b = jnp.pad(w3b, ((0, 0), (0, pad_o)))
        b3 = jnp.pad(b3, ((0, pad_o),))
    b3 = b3.reshape(1, O_pad).astype(jnp.float32)

    # Coalesce per-layer 1-row params so each layer's bias/LN params are one DMA.
    p1 = jnp.stack([params["b1"], params["g1"], params["be1"]], 0).astype(jnp.float32)
    p2 = jnp.stack([params["b2"], params["g2"], params["be2"]], 0).astype(jnp.float32)

    # bf16 weights by default (native MXU dtype); LN/bias/accumulation stay f32.
    w1 = params["w1"].astype(weight_dtype)
    w2 = params["w2"].astype(weight_dtype)
    w3a = w3a.astype(weight_dtype)
    w3b = w3b.astype(weight_dtype)

    operands = (x_p, w1, p1, w2, p2, w3a, w3b, b3)
    nb = B_pad // TB
    grid = (nb, n_k)
    ws = jnp.dtype(weight_dtype).itemsize

    # VMEM budget derived from the chip (v7x has only 64 MiB per TensorCore).
    try:
        vmem_cap = int(pltpu.get_tpu_info().vmem_capacity_bytes)
    except Exception:
        vmem_cap = 64 << 20
    resident = (int(w1.size) + int(w3a.size) + int(w3b.size)) * ws \
        + (int(p1.size) + int(p2.size) + int(b3.size)) * 4
    w2_buf = (2 if n_k > 1 else 1) * TK * 4 * D * ws
    act = 2 * (TB * D + TB * O_pad) * 4
    scr = (TB * K2 * ws + TB * 4 * D * 4) if n_k > 1 else 0
    needed = 2 * resident + w2_buf + act + scr   # 2x resident in case Buffered(1) falls back
    vmem_limit = int(min(max(32 << 20, needed * 3 // 2), vmem_cap * 7 // 8))

    flops = 2 * B_pad * (D * K2 + K2 * 4 * D + 5 * D * O_pad)
    bytes_accessed = int(
        sum(int(a.size) * a.dtype.itemsize for a in operands)
        + ((nb - 1) * int(w2.size) * ws if n_k > 1 else 0)   # w2 re-streamed per batch tile
        + B_pad * O_pad * jnp.dtype(out_dtype).itemsize)
    cost = pl.CostEstimate(flops=flops, transcendentals=2 * B_pad,
                           bytes_accessed=bytes_accessed)

    kernel = functools.partial(multilayer_kernel, n_k=n_k, k_tile=TK)
    scratch_shapes = []
    if n_k > 1:
        scratch_shapes = [pltpu.VMEM((TB, K2), weight_dtype),
                          pltpu.VMEM((TB, 4 * D), jnp.float32)]

    def build_and_call(single_buffer_resident):
        def resident_spec(shape):
            imap = lambda i, k: (0,) * len(shape)
            if single_buffer_resident:
                # Constant index_map => never re-fetched; double-buffering these
                # resident operands is pure VMEM waste.
                return pl.BlockSpec(shape, imap, pipeline_mode=pl.Buffered(1))
            return pl.BlockSpec(shape, imap)

        if n_k > 1:
            w2_spec = pl.BlockSpec((TK, 4 * D), lambda i, k: (k, 0))  # streamed
        else:
            w2_spec = resident_spec(w2.shape)

        in_specs = [
            pl.BlockSpec((TB, D), lambda i, k: (i, 0)),
            resident_spec(w1.shape),
            resident_spec(p1.shape),
            w2_spec,
            resident_spec(p2.shape),
            resident_spec(w3a.shape),
            resident_spec(w3b.shape),
            resident_spec(b3.shape),
        ]
        out_spec = pl.BlockSpec((TB, O_pad), lambda i, k: (i, 0))

        return pl.pallas_call(
            kernel,
            out_shape=jax.ShapeDtypeStruct((B_pad, O_pad), out_dtype),
            grid_spec=pltpu.PrefetchScalarGridSpec(
                num_scalar_prefetch=0,
                grid=grid,
                in_specs=in_specs,
                out_specs=out_spec,
                scratch_shapes=scratch_shapes,
            ),
            compiler_params=pltpu.CompilerParams(
                dimension_semantics=("parallel", "arbitrary"),
                vmem_limit_bytes=vmem_limit,
            ),
            cost_estimate=cost,
        )(*operands)

    try:
        out = build_and_call(True)
    except Exception:
        # TODO(synk): pipeline_mode=pl.Buffered(1) not supported by this JAX build;
        # fall back to default double-buffered resident weights.
        out = build_and_call(False)

    return out[:B, :O]


def init_params(key, input_size, output_size):
    """Deterministic init matching nn.Linear / nn.LayerNorm shapes.
    Weights stored as [in_features, out_features] (transposed vs. PyTorch)."""
    D = input_size
    ks = jax.random.split(key, 3)

    def lin(k, fan_in, fan_out):
        bound = 1.0 / jnp.sqrt(fan_in)
        kw, kb = jax.random.split(k)
        w = jax.random.uniform(kw, (fan_in, fan_out), jnp.float32, -bound, bound)
        b = jax.random.uniform(kb, (fan_out,), jnp.float32, -bound, bound)
        return w, b

    w1, b1 = lin(ks[0], D, 2 * D)
    w2, b2 = lin(ks[1], 2 * D, 4 * D)
    w3, b3 = lin(ks[2], 4 * D + D, output_size)
    return {
        "w1": w1, "b1": b1,
        "g1": jnp.ones((2 * D,), jnp.float32), "be1": jnp.zeros((2 * D,), jnp.float32),
        "w2": w2, "b2": b2,
        "g2": jnp.ones((4 * D,), jnp.float32), "be2": jnp.zeros((4 * D,), jnp.float32),
        "w3": w3, "b3": b3,
    }


def reference_forward(x, params):
    """Pure-JAX reference mirroring the PyTorch module exactly."""
    def ln(h, g, b):
        m = jnp.mean(h, -1, keepdims=True)
        v = jnp.mean((h - m) ** 2, -1, keepdims=True)
        return (h - m) / jnp.sqrt(v + LN_EPS) * g + b

    h = x @ params["w1"] + params["b1"]
    h = jnp.maximum(ln(h, params["g1"], params["be1"]), 0.0)
    h = h @ params["w2"] + params["b2"]
    h = jnp.maximum(ln(h, params["g2"], params["be2"]), 0.0)
    cat = jnp.concatenate([h, x], axis=-1)
    return cat @ params["w3"] + params["b3"]


if __name__ == "__main__":
    key = jax.random.PRNGKey(0)
    kx, kp, kx2, kp2 = jax.random.split(key, 4)

    # Small config matching the module: MultipleLayers(input_size=32, output_size=16)
    batch, input_size, output_size = 8, 32, 16
    x = jax.random.normal(kx, (batch, input_size), jnp.float32)
    params = init_params(kp, input_size, output_size)
    ref = reference_forward(x, params)

    # f32-weight path (bit-faithful to the PyTorch module): tight tolerance.
    out_f32 = jax.block_until_ready(
        multilayer_forward(x, params, weight_dtype=jnp.float32))
    assert out_f32.shape == (batch, output_size)
    err = float(jnp.max(jnp.abs(out_f32 - ref)))
    assert jnp.allclose(out_f32, ref, atol=1e-4, rtol=1e-4), err

    # Default bf16-weight path (native MXU dtype; deliberate numerics change).
    out_bf16 = jax.block_until_ready(multilayer_forward(x, params))
    assert out_bf16.shape == (batch, output_size)
    assert bool(jnp.all(jnp.isfinite(out_bf16)))
    assert float(jnp.max(jnp.abs(out_bf16 - ref))) < 0.5

    # Exercise the batch grid (nb=2) and the streamed-w2 K-reduction path (n_k=2).
    b2_, d2_, o2_ = 16, 128, 24
    x2 = jax.random.normal(kx2, (b2_, d2_), jnp.float32)
    params2 = init_params(kp2, d2_, o2_)
    ref2 = reference_forward(x2, params2)
    out2 = jax.block_until_ready(
        multilayer_forward(x2, params2, weight_dtype=jnp.float32, k_tile=128))
    assert out2.shape == (b2_, o2_)
    err2 = float(jnp.max(jnp.abs(out2 - ref2)))
    assert jnp.allclose(out2, ref2, atol=2e-3, rtol=2e-3), err2

    print("KERNEL_OK")
</pallas_src>

<mosaic_0001>
module attributes {stable_mosaic.version = 11 : i64} {
  func.func @multilayer_kernel(%arg0: i32, %arg1: i32, %arg2: memref<8x32xf32, #tpu.memory_space<vmem>>, %arg3: memref<32x64xf32, #tpu.memory_space<vmem>>, %arg4: memref<3x64xf32, #tpu.memory_space<vmem>>, %arg5: memref<64x128xf32, #tpu.memory_space<vmem>>, %arg6: memref<3x128xf32, #tpu.memory_space<vmem>>, %arg7: memref<128x128xf32, #tpu.memory_space<vmem>>, %arg8: memref<32x128xf32, #tpu.memory_space<vmem>>, %arg9: memref<1x128xf32, #tpu.memory_space<vmem>>, %arg10: memref<8x128xf32, #tpu.memory_space<vmem>>) attributes {dimension_semantics = [#tpu.dimension_semantics<parallel>, #tpu.dimension_semantics<arbitrary>], iteration_bounds = array<i64: 1, 1>, scalar_prefetch = 0 : i64, scratch_operands = 0 : i64, tpu.core_type = #tpu.core_type<tc>, window_params = [{transform_indices = @transform_0, window_bounds = array<i64: 8, 32>}, {pipeline_mode = #tpu.pipeline_mode<synchronous>, transform_indices = @transform_1, window_bounds = array<i64: 32, 64>}, {pipeline_mode = #tpu.pipeline_mode<synchronous>, transform_indices = @transform_2, window_bounds = array<i64: 3, 64>}, {pipeline_mode = #tpu.pipeline_mode<synchronous>, transform_indices = @transform_3, window_bounds = array<i64: 64, 128>}, {pipeline_mode = #tpu.pipeline_mode<synchronous>, transform_indices = @transform_4, window_bounds = array<i64: 3, 128>}, {pipeline_mode = #tpu.pipeline_mode<synchronous>, transform_indices = @transform_5, window_bounds = array<i64: 128, 128>}, {pipeline_mode = #tpu.pipeline_mode<synchronous>, transform_indices = @transform_6, window_bounds = array<i64: 32, 128>}, {pipeline_mode = #tpu.pipeline_mode<synchronous>, transform_indices = @transform_7, window_bounds = array<i64: 1, 128>}, {transform_indices = @transform_8, window_bounds = array<i64: 8, 128>}]} {
    %c0 = arith.constant 0 : index
    %c0_0 = arith.constant 0 : index
    %0 = vector.load %arg2[%c0, %c0_0] : memref<8x32xf32, #tpu.memory_space<vmem>>, vector<8x32xf32>
    %c0_1 = arith.constant 0 : index
    %c0_2 = arith.constant 0 : index
    %1 = vector.load %arg3[%c0_1, %c0_2] : memref<32x64xf32, #tpu.memory_space<vmem>>, vector<32x64xf32>
    %cst = arith.constant dense<0.000000e+00> : vector<8x64xf32>
    %2 = tpu.matmul %0, %1, %cst {dimension_numbers = #tpu.dot_dimension_numbers<[1], [0], [0], [1], [0, 0, 1, 1], [], []>} : vector<8x32xf32>, vector<32x64xf32>, vector<8x64xf32> -> vector<8x64xf32>
    %c0_3 = arith.constant 0 : index
    %c0_4 = arith.constant 0 : index
    %3 = vector.load %arg4[%c0_3, %c0_4] : memref<3x64xf32, #tpu.memory_space<vmem>>, vector<1x64xf32>
    %4 = vector.broadcast %3 : vector<1x64xf32> to vector<8x64xf32>
    %5 = arith.addf %2, %4 : vector<8x64xf32>
    %c1 = arith.constant 1 : index
    %c0_5 = arith.constant 0 : index
    %6 = vector.load %arg4[%c1, %c0_5] : memref<3x64xf32, #tpu.memory_space<vmem>>, vector<1x64xf32>
    %c2 = arith.constant 2 : index
    %c0_6 = arith.constant 0 : index
    %7 = vector.load %arg4[%c2, %c0_6] : memref<3x64xf32, #tpu.memory_space<vmem>>, vector<1x64xf32>
    %cst_7 = arith.constant dense<0.000000e+00> : vector<8xf32>
    %8 = vector.multi_reduction <add>, %5, %cst_7 [1] : vector<8x64xf32> to vector<8xf32>
    %9 = vector.shape_cast %8 : vector<8xf32> to vector<8x1xf32>
    %cst_8 = arith.constant 6.400000e+01 : f32
    %10 = vector.broadcast %cst_8 : f32 to vector<8x1xf32>
    %11 = arith.divf %9, %10 : vector<8x1xf32>
    %12 = vector.broadcast %11 : vector<8x1xf32> to vector<8x64xf32>
    %13 = arith.subf %5, %12 : vector<8x64xf32>
    %14 = arith.mulf %13, %13 : vector<8x64xf32>
    %cst_9 = arith.constant dense<0.000000e+00> : vector<8xf32>
    %15 = vector.multi_reduction <add>, %14, %cst_9 [1] : vector<8x64xf32> to vector<8xf32>
    %16 = vector.shape_cast %15 : vector<8xf32> to vector<8x1xf32>
    %cst_10 = arith.constant 6.400000e+01 : f32
    %17 = vector.broadcast %cst_10 : f32 to vector<8x1xf32>
    %18 = arith.divf %16, %17 : vector<8x1xf32>
    %cst_11 = arith.constant 9.99999974E-6 : f32
    %19 = vector.broadcast %cst_11 : f32 to vector<8x1xf32>
    %20 = arith.addf %18, %19 : vector<8x1xf32>
    %21 = math.rsqrt %20 : vector<8x1xf32>
    %22 = vector.broadcast %21 : vector<8x1xf32> to vector<8x64xf32>
    %23 = arith.mulf %13, %22 : vector<8x64xf32>
    %24 = vector.broadcast %6 : vector<1x64xf32> to vector<8x64xf32>
    %25 = arith.mulf %23, %24 : vector<8x64xf32>
    %26 = vector.broadcast %7 : vector<1x64xf32> to vector<8x64xf32>
    %27 = arith.addf %25, %26 : vector<8x64xf32>
    %cst_12 = arith.constant 0.000000e+00 : f32
    %28 = vector.broadcast %cst_12 : f32 to vector<8x64xf32>
    %29 = arith.maximumf %27, %28 : vector<8x64xf32>
    %c0_13 = arith.constant 0 : index
    %c0_14 = arith.constant 0 : index
    %30 = vector.load %arg5[%c0_13, %c0_14] : memref<64x128xf32, #tpu.memory_space<vmem>>, vector<64x128xf32>
    %cst_15 = arith.constant dense<0.000000e+00> : vector<8x128xf32>
    %31 = tpu.matmul %29, %30, %cst_15 {dimension_numbers = #tpu.dot_dimension_numbers<[1], [0], [0], [1], [0, 0, 1, 1], [], []>} : vector<8x64xf32>, vector<64x128xf32>, vector<8x128xf32> -> vector<8x128xf32>
    %c0_16 = arith.constant 0 : index
    %c0_17 = arith.constant 0 : index
    %32 = vector.load %arg6[%c0_16, %c0_17] : memref<3x128xf32, #tpu.memory_space<vmem>>, vector<1x128xf32>
    %33 = vector.broadcast %32 : vector<1x128xf32> to vector<8x128xf32>
    %34 = arith.addf %31, %33 : vector<8x128xf32>
    %c1_18 = arith.constant 1 : index
    %c0_19 = arith.constant 0 : index
    %35 = vector.load %arg6[%c1_18, %c0_19] : memref<3x128xf32, #tpu.memory_space<vmem>>, vector<1x128xf32>
    %c2_20 = arith.constant 2 : index
    %c0_21 = arith.constant 0 : index
    %36 = vector.load %arg6[%c2_20, %c0_21] : memref<3x128xf32, #tpu.memory_space<vmem>>, vector<1x128xf32>
    %cst_22 = arith.constant dense<0.000000e+00> : vector<8xf32>
    %37 = vector.multi_reduction <add>, %34, %cst_22 [1] : vector<8x128xf32> to vector<8xf32>
    %38 = vector.shape_cast %37 : vector<8xf32> to vector<8x1xf32>
    %cst_23 = arith.constant 1.280000e+02 : f32
    %39 = vector.broadcast %cst_23 : f32 to vector<8x1xf32>
    %40 = arith.divf %38, %39 : vector<8x1xf32>
    %41 = vector.broadcast %40 : vector<8x1xf32> to vector<8x128xf32>
    %42 = arith.subf %34, %41 : vector<8x128xf32>
    %43 = arith.mulf %42, %42 : vector<8x128xf32>
    %cst_24 = arith.constant dense<0.000000e+00> : vector<8xf32>
    %44 = vector.multi_reduction <add>, %43, %cst_24 [1] : vector<8x128xf32> to vector<8xf32>
    %45 = vector.shape_cast %44 : vector<8xf32> to vector<8x1xf32>
    %cst_25 = arith.constant 1.280000e+02 : f32
    %46 = vector.broadcast %cst_25 : f32 to vector<8x1xf32>
    %47 = arith.divf %45, %46 : vector<8x1xf32>
    %cst_26 = arith.constant 9.99999974E-6 : f32
    %48 = vector.broadcast %cst_26 : f32 to vector<8x1xf32>
    %49 = arith.addf %47, %48 : vector<8x1xf32>
    %50 = math.rsqrt %49 : vector<8x1xf32>
    %51 = vector.broadcast %50 : vector<8x1xf32> to vector<8x128xf32>
    %52 = arith.mulf %42, %51 : vector<8x128xf32>
    %53 = vector.broadcast %35 : vector<1x128xf32> to vector<8x128xf32>
    %54 = arith.mulf %52, %53 : vector<8x128xf32>
    %55 = vector.broadcast %36 : vector<1x128xf32> to vector<8x128xf32>
    %56 = arith.addf %54, %55 : vector<8x128xf32>
    %cst_27 = arith.constant 0.000000e+00 : f32
    %57 = vector.broadcast %cst_27 : f32 to vector<8x128xf32>
    %58 = arith.maximumf %56, %57 : vector<8x128xf32>
    %c0_28 = arith.constant 0 : index
    %c0_29 = arith.constant 0 : index
    %59 = vector.load %arg7[%c0_28, %c0_29] : memref<128x128xf32, #tpu.memory_space<vmem>>, vector<128x128xf32>
    %cst_30 = arith.constant dense<0.000000e+00> : vector<8x128xf32>
    %60 = tpu.matmul %58, %59, %cst_30 {dimension_numbers = #tpu.dot_dimension_numbers<[1], [0], [0], [1], [0, 0, 1, 1], [], []>} : vector<8x128xf32>, vector<128x128xf32>, vector<8x128xf32> -> vector<8x128xf32>
    %c0_31 = arith.constant 0 : index
    %c0_32 = arith.constant 0 : index
    %61 = vector.load %arg8[%c0_31, %c0_32] : memref<32x128xf32, #tpu.memory_space<vmem>>, vector<32x128xf32>
    %cst_33 = arith.constant dense<0.000000e+00> : vector<8x128xf32>
    %62 = tpu.matmul %0, %61, %cst_33 {dimension_numbers = #tpu.dot_dimension_numbers<[1], [0], [0], [1], [0, 0, 1, 1], [], []>} : vector<8x32xf32>, vector<32x128xf32>, vector<8x128xf32> -> vector<8x128xf32>
    %63 = arith.addf %60, %62 : vector<8x128xf32>
    %c0_34 = arith.constant 0 : index
    %c0_35 = arith.constant 0 : index
    %64 = vector.load %arg9[%c0_34, %c0_35] : memref<1x128xf32, #tpu.memory_space<vmem>>, vector<1x128xf32>
    %65 = vector.broadcast %64 : vector<1x128xf32> to vector<8x128xf32>
    %66 = arith.addf %63, %65 : vector<8x128xf32>
    %c0_36 = arith.constant 0 : index
    %c0_37 = arith.constant 0 : index
    %67 = vector.load %arg10[%c0_36, %c0_37] : memref<8x128xf32, #tpu.memory_space<vmem>>, vector<8x128xf32>
    tpu.vector_store %arg10[%c0_36, %c0_37], %66 {strides = array<i32>} : memref<8x128xf32, #tpu.memory_space<vmem>>, vector<8x128xf32>,
    return
  }
  func.func @transform_0(%arg0: i32, %arg1: i32) -> (i32, i32) {
    %c0_i32 = arith.constant 0 : i32
    %c0_i32_0 = arith.constant 0 : i32
    return %arg0, %c0_i32 : i32, i32
  }
  func.func @transform_1(%arg0: i32, %arg1: i32) -> (i32, i32) {
    %c0_i32 = arith.constant 0 : i32
    %c0_i32_0 = arith.constant 0 : i32
    %c0_i32_1 = arith.constant 0 : i32
    return %c0_i32, %c0_i32_0 : i32, i32
  }
  func.func @transform_2(%arg0: i32, %arg1: i32) -> (i32, i32) {
    %c0_i32 = arith.constant 0 : i32
    %c0_i32_0 = arith.constant 0 : i32
    %c0_i32_1 = arith.constant 0 : i32
    return %c0_i32, %c0_i32_0 : i32, i32
  }
  func.func @transform_3(%arg0: i32, %arg1: i32) -> (i32, i32) {
    %c0_i32 = arith.constant 0 : i32
    %c0_i32_0 = arith.constant 0 : i32
    %c0_i32_1 = arith.constant 0 : i32
    return %c0_i32, %c0_i32_0 : i32, i32
  }
  func.func @transform_4(%arg0: i32, %arg1: i32) -> (i32, i32) {
    %c0_i32 = arith.constant 0 : i32
    %c0_i32_0 = arith.constant 0 : i32
    %c0_i32_1 = arith.constant 0 : i32
    return %c0_i32, %c0_i32_0 : i32, i32
  }
  func.func @transform_5(%arg0: i32, %arg1: i32) -> (i32, i32) {
    %c0_i32 = arith.constant 0 : i32
    %c0_i32_0 = arith.constant 0 : i32
    %c0_i32_1 = arith.constant 0 : i32
    return %c0_i32, %c0_i32_0 : i32, i32
  }
  func.func @transform_6(%arg0: i32, %arg1: i32) -> (i32, i32) {
    %c0_i32 = arith.constant 0 : i32
    %c0_i32_0 = arith.constant 0 : i32
    %c0_i32_1 = arith.constant 0 : i32
    return %c0_i32, %c0_i32_0 : i32, i32
  }
  func.func @transform_7(%arg0: i32, %arg1: i32) -> (i32, i32) {
    %c0_i32 = arith.constant 0 : i32
    %c0_i32_0 = arith.constant 0 : i32
    %c0_i32_1 = arith.constant 0 : i32
    return %c0_i32, %c0_i32_0 : i32, i32
  }
  func.func @transform_8(%arg0: i32, %arg1: i32) -> (i32, i32) {
    %c0_i32 = arith.constant 0 : i32
    %c0_i32_0 = arith.constant 0 : i32
    return %arg0, %c0_i32 : i32, i32
  }
}

module attributes {stable_mosaic.version = 11 : i64} {
  func.func @multilayer_kernel(%arg0: i32, %arg1: i32, %arg2: memref<8x32xf32, #tpu.memory_space<vmem>>, %arg3: memref<32x64xf32, #tpu.memory_space<vmem>>, %arg4: memref<3x64xf32, #tpu.memory_space<vmem>>, %arg5: memref<64x128xf32, #tpu.memory_space<vmem>>, %arg6: memref<3x128xf32, #tpu.memory_space<vmem>>, %arg7: memref<128x128xf32, #tpu.memory_space<vmem>>, %arg8: memref<32x128xf32, #tpu.memory_space<vmem>>, %arg9: memref<1x128xf32, #tpu.memory_space<vmem>>, %arg10: memref<8x128xf32, #tpu.memory_space<vmem>>) attributes {dimension_semantics = [#tpu.dimension_semantics<parallel>, #tpu.dimension_semantics<arbitrary>], iteration_bounds = array<i64: 1, 1>, scalar_prefetch = 0 : i64, scratch_operands = 0 : i64, tpu.core_type = #tpu.core_type<tc>, window_params = [{transform_indices = @transform_0, window_bounds = array<i64: 8, 32>}, {pipeline_mode = #tpu.pipeline_mode<synchronous>, transform_indices = @transform_1, window_bounds = array<i64: 32, 64>}, {pipeline_mode = #tpu.pipeline_mode<synchronous>, transform_indices = @transform_2, window_bounds = array<i64: 3, 64>}, {pipeline_mode = #tpu.pipeline_mode<synchronous>, transform_indices = @transform_3, window_bounds = array<i64: 64, 128>}, {pipeline_mode = #tpu.pipeline_mode<synchronous>, transform_indices = @transform_4, window_bounds = array<i64: 3, 128>}, {pipeline_mode = #tpu.pipeline_mode<synchronous>, transform_indices = @transform_5, window_bounds = array<i64: 128, 128>}, {pipeline_mode = #tpu.pipeline_mode<synchronous>, transform_indices = @transform_6, window_bounds = array<i64: 32, 128>}, {pipeline_mode = #tpu.pipeline_mode<synchronous>, transform_indices = @transform_7, window_bounds = array<i64: 1, 128>}, {transform_indices = @transform_8, window_bounds = array<i64: 8, 128>}]} {
    %c0 = arith.constant 0 : index
    %c0_0 = arith.constant 0 : index
    %0 = vector.load %arg2[%c0, %c0_0] : memref<8x32xf32, #tpu.memory_space<vmem>>, vector<8x32xf32>
    %c0_1 = arith.constant 0 : index
    %c0_2 = arith.constant 0 : index
    %1 = vector.load %arg3[%c0_1, %c0_2] : memref<32x64xf32, #tpu.memory_space<vmem>>, vector<32x64xf32>
    %cst = arith.constant dense<0.000000e+00> : vector<8x64xf32>
    %2 = tpu.matmul %0, %1, %cst {dimension_numbers = #tpu.dot_dimension_numbers<[1], [0], [0], [1], [0, 0, 1, 1], [], []>} : vector<8x32xf32>, vector<32x64xf32>, vector<8x64xf32> -> vector<8x64xf32>
    %c0_3 = arith.constant 0 : index
    %c0_4 = arith.constant 0 : index
    %3 = vector.load %arg4[%c0_3, %c0_4] : memref<3x64xf32, #tpu.memory_space<vmem>>, vector<1x64xf32>
    %4 = vector.broadcast %3 : vector<1x64xf32> to vector<8x64xf32>
    %5 = arith.addf %2, %4 : vector<8x64xf32>
    %c1 = arith.constant 1 : index
    %c0_5 = arith.constant 0 : index
    %6 = vector.load %arg4[%c1, %c0_5] : memref<3x64xf32, #tpu.memory_space<vmem>>, vector<1x64xf32>
    %c2 = arith.constant 2 : index
    %c0_6 = arith.constant 0 : index
    %7 = vector.load %arg4[%c2, %c0_6] : memref<3x64xf32, #tpu.memory_space<vmem>>, vector<1x64xf32>
    %cst_7 = arith.constant dense<0.000000e+00> : vector<8xf32>
    %8 = vector.multi_reduction <add>, %5, %cst_7 [1] : vector<8x64xf32> to vector<8xf32>
    %9 = vector.shape_cast %8 : vector<8xf32> to vector<8x1xf32>
    %cst_8 = arith.constant 6.400000e+01 : f32
    %10 = vector.broadcast %cst_8 : f32 to vector<8x1xf32>
    %11 = arith.divf %9, %10 : vector<8x1xf32>
    %12 = vector.broadcast %11 : vector<8x1xf32> to vector<8x64xf32>
    %13 = arith.subf %5, %12 : vector<8x64xf32>
    %14 = arith.mulf %13, %13 : vector<8x64xf32>
    %cst_9 = arith.constant dense<0.000000e+00> : vector<8xf32>
    %15 = vector.multi_reduction <add>, %14, %cst_9 [1] : vector<8x64xf32> to vector<8xf32>
    %16 = vector.shape_cast %15 : vector<8xf32> to vector<8x1xf32>
    %cst_10 = arith.constant 6.400000e+01 : f32
    %17 = vector.broadcast %cst_10 : f32 to vector<8x1xf32>
    %18 = arith.divf %16, %17 : vector<8x1xf32>
    %cst_11 = arith.constant 9.99999974E-6 : f32
    %19 = vector.broadcast %cst_11 : f32 to vector<8x1xf32>
    %20 = arith.addf %18, %19 : vector<8x1xf32>
    %21 = math.rsqrt %20 : vector<8x1xf32>
    %22 = vector.broadcast %21 : vector<8x1xf32> to vector<8x64xf32>
    %23 = arith.mulf %13, %22 : vector<8x64xf32>
    %24 = vector.broadcast %6 : vector<1x64xf32> to vector<8x64xf32>
    %25 = arith.mulf %23, %24 : vector<8x64xf32>
    %26 = vector.broadcast %7 : vector<1x64xf32> to vector<8x64xf32>
    %27 = arith.addf %25, %26 : vector<8x64xf32>
    %cst_12 = arith.constant 0.000000e+00 : f32
    %28 = vector.broadcast %cst_12 : f32 to vector<8x64xf32>
    %29 = arith.maximumf %27, %28 : vector<8x64xf32>
    %c0_13 = arith.constant 0 : index
    %c0_14 = arith.constant 0 : index
    %30 = vector.load %arg5[%c0_13, %c0_14] : memref<64x128xf32, #tpu.memory_space<vmem>>, vector<64x128xf32>
    %cst_15 = arith.constant dense<0.000000e+00> : vector<8x128xf32>
    %31 = tpu.matmul %29, %30, %cst_15 {dimension_numbers = #tpu.dot_dimension_numbers<[1], [0], [0], [1], [0, 0, 1, 1], [], []>} : vector<8x64xf32>, vector<64x128xf32>, vector<8x128xf32> -> vector<8x128xf32>
    %c0_16 = arith.constant 0 : index
    %c0_17 = arith.constant 0 : index
    %32 = vector.load %arg6[%c0_16, %c0_17] : memref<3x128xf32, #tpu.memory_space<vmem>>, vector<1x128xf32>
    %33 = vector.broadcast %32 : vector<1x128xf32> to vector<8x128xf32>
    %34 = arith.addf %31, %33 : vector<8x128xf32>
    %c1_18 = arith.constant 1 : index
    %c0_19 = arith.constant 0 : index
    %35 = vector.load %arg6[%c1_18, %c0_19] : memref<3x128xf32, #tpu.memory_space<vmem>>, vector<1x128xf32>
    %c2_20 = arith.constant 2 : index
    %c0_21 = arith.constant 0 : index
    %36 = vector.load %arg6[%c2_20, %c0_21] : memref<3x128xf32, #tpu.memory_space<vmem>>, vector<1x128xf32>
    %cst_22 = arith.constant dense<0.000000e+00> : vector<8xf32>
    %37 = vector.multi_reduction <add>, %34, %cst_22 [1] : vector<8x128xf32> to vector<8xf32>
    %38 = vector.shape_cast %37 : vector<8xf32> to vector<8x1xf32>
    %cst_23 = arith.constant 1.280000e+02 : f32
    %39 = vector.broadcast %cst_23 : f32 to vector<8x1xf32>
    %40 = arith.divf %38, %39 : vector<8x1xf32>
    %41 = vector.broadcast %40 : vector<8x1xf32> to vector<8x128xf32>
    %42 = arith.subf %34, %41 : vector<8x128xf32>
    %43 = arith.mulf %42, %42 : vector<8x128xf32>
    %cst_24 = arith.constant dense<0.000000e+00> : vector<8xf32>
    %44 = vector.multi_reduction <add>, %43, %cst_24 [1] : vector<8x128xf32> to vector<8xf32>
    %45 = vector.shape_cast %44 : vector<8xf32> to vector<8x1xf32>
    %cst_25 = arith.constant 1.280000e+02 : f32
    %46 = vector.broadcast %cst_25 : f32 to vector<8x1xf32>
    %47 = arith.divf %45, %46 : vector<8x1xf32>
    %cst_26 = arith.constant 9.99999974E-6 : f32
    %48 = vector.broadcast %cst_26 : f32 to vector<8x1xf32>
    %49 = arith.addf %47, %48 : vector<8x1xf32>
    %50 = math.rsqrt %49 : vector<8x1xf32>
    %51 = vector.broadcast %50 : vector<8x1xf32> to vector<8x128xf32>
    %52 = arith.mulf %42, %51 : vector<8x128xf32>
    %53 = vector.broadcast %35 : vector<1x128xf32> to vector<8x128xf32>
    %54 = arith.mulf %52, %53 : vector<8x128xf32>
    %55 = vector.broadcast %36 : vector<1x128xf32> to vector<8x128xf32>
    %56 = arith.addf %54, %55 : vector<8x128xf32>
    %cst_27 = arith.constant 0.000000e+00 : f32
    %57 = vector.broadcast %cst_27 : f32 to vector<8x128xf32>
    %58 = arith.maximumf %56, %57 : vector<8x128xf32>
    %c0_28 = arith.constant 0 : index
    %c0_29 = arith.constant 0 : index
    %59 = vector.load %arg7[%c0_28, %c0_29] : memref<128x128xf32, #tpu.memory_space<vmem>>, vector<128x128xf32>
    %cst_30 = arith.constant dense<0.000000e+00> : vector<8x128xf32>
    %60 = tpu.matmul %58, %59, %cst_30 {dimension_numbers = #tpu.dot_dimension_numbers<[1], [0], [0], [1], [0, 0, 1, 1], [], []>} : vector<8x128xf32>, vector<128x128xf32>, vector<8x128xf32> -> vector<8x128xf32>
    %c0_31 = arith.constant 0 : index
    %c0_32 = arith.constant 0 : index
    %61 = vector.load %arg8[%c0_31, %c0_32] : memref<32x128xf32, #tpu.memory_space<vmem>>, vector<32x128xf32>
    %cst_33 = arith.constant dense<0.000000e+00> : vector<8x128xf32>
    %62 = tpu.matmul %0, %61, %cst_33 {dimension_numbers = #tpu.dot_dimension_numbers<[1], [0], [0], [1], [0, 0, 1, 1], [], []>} : vector<8x32xf32>, vector<32x128xf32>, vector<8x128xf32> -> vector<8x128xf32>
    %63 = arith.addf %60, %62 : vector<8x128xf32>
    %c0_34 = arith.constant 0 : index
    %c0_35 = arith.constant 0 : index
    %64 = vector.load %arg9[%c0_34, %c0_35] : memref<1x128xf32, #tpu.memory_space<vmem>>, vector<1x128xf32>
    %65 = vector.broadcast %64 : vector<1x128xf32> to vector<8x128xf32>
    %66 = arith.addf %63, %65 : vector<8x128xf32>
    %c0_36 = arith.constant 0 : index
    %c0_37 = arith.constant 0 : index
    %67 = vector.load %arg10[%c0_36, %c0_37] : memref<8x128xf32, #tpu.memory_space<vmem>>, vector<8x128xf32>
    tpu.vector_store %arg10[%c0_36, %c0_37], %66 {strides = array<i32>} : memref<8x128xf32, #tpu.memory_space<vmem>>, vector<8x128xf32>,
    return
  }
  func.func @transform_0(%arg0: i32, %arg1: i32) -> (i32, i32) {
    %c0_i32 = arith.constant 0 : i32
    %c0_i32_0 = arith.constant 0 : i32
    return %arg0, %c0_i32 : i32, i32
  }
  func.func @transform_1(%arg0: i32, %arg1: i32) -> (i32, i32) {
    %c0_i32 = arith.constant 0 : i32
    %c0_i32_0 = arith.constant 0 : i32
    %c0_i32_1 = arith.constant 0 : i32
    return %c0_i32, %c0_i32_0 : i32, i32
  }
  func.func @transform_2(%arg0: i32, %arg1: i32) -> (i32, i32) {
    %c0_i32 = arith.constant 0 : i32
    %c0_i32_0 = arith.constant 0 : i32
    %c0_i32_1 = arith.constant 0 : i32
    return %c0_i32, %c0_i32_0 : i32, i32
  }
  func.func @transform_3(%arg0: i32, %arg1: i32) -> (i32, i32) {
    %c0_i32 = arith.constant 0 : i32
    %c0_i32_0 = arith.constant 0 : i32
    %c0_i32_1 = arith.constant 0 : i32
    return %c0_i32, %c0_i32_0 : i32, i32
  }
  func.func @transform_4(%arg0: i32, %arg1: i32) -> (i32, i32) {
    %c0_i32 = arith.constant 0 : i32
    %c0_i32_0 = arith.constant 0 : i32
    %c0_i32_1 = arith.constant 0 : i32
    return %c0_i32, %c0_i32_0 : i32, i32
  }
  func.func @transform_5(%arg0: i32, %arg1: i32) -> (i32, i32) {
    %c0_i32 = arith.constant 0 : i32
    %c0_i32_0 = arith.constant 0 : i32
    %c0_i32_1 = arith.constant 0 : i32
    return %c0_i32, %c0_i32_0 : i32, i32
  }
  func.func @transform_6(%arg0: i32, %arg1: i32) -> (i32, i32) {
    %c0_i32 = arith.constant 0 : i32
    %c0_i32_0 = arith.constant 0 : i32
    %c0_i32_1 = arith.constant 0 : i32
    return %c0_i32, %c0_i32_0 : i32, i32
  }
  func.func @transform_7(%arg0: i32, %arg1: i32) -> (i32, i32) {
    %c0_i32 = arith.constant 0 : i32
    %c0_i32_0 = arith.constant 0 : i32
    %c0_i32_1 = arith.constant 0 : i32
    return %c0_i32, %c0_i32_0 : i32, i32
  }
  func.func @transform_8(%arg0: i32, %arg1: i32) -> (i32, i32) {
    %c0_i32 = arith.constant 0 : i32
    %c0_i32_0 = arith.constant 0 : i32
    return %arg0, %c0_i32 : i32, i32
  }
}

</mosaic_0001>

<llo_original>
// kernel: tpu_custom_call.1
$region0: #{tpu_custom_call.1}
  #allocation0 [shape = 'u32[]', space=smem, size = 0x4, offset = 0x4, fixed_abs, tag = 'smem constant byte address 0x4 - core index']
  #allocation1 [shape = 'u32[72,128]{1,0:T(1,128)}', space=vmem, size = 0x9000, scoped, tag = 'internal scratch']
  %s0 = inlined_call_operand.hbm [shape: f32[8,32], index: 0, kind: input, shape index: {}]
  %s1 = inlined_call_operand.hbm [shape: f32[32,64], index: 1, kind: input, shape index: {}]
  %s2 = inlined_call_operand.hbm [shape: f32[3,64], index: 2, kind: input, shape index: {}]
  %s3 = inlined_call_operand.hbm [shape: f32[64,128], index: 3, kind: input, shape index: {}]
  %s4 = inlined_call_operand.hbm [shape: f32[3,128], index: 4, kind: input, shape index: {}]
  %s5 = inlined_call_operand.hbm [shape: f32[128,128], index: 5, kind: input, shape index: {}]
  %s6 = inlined_call_operand.hbm [shape: f32[32,128], index: 6, kind: input, shape index: {}]
  %s7 = inlined_call_operand.vmem [shape: f32[1,128], index: 7, kind: input, shape index: {}]
  %s8 = inlined_call_operand.hbm [shape: f32[8,128], index: 8, kind: output, shape index: {}]
  %s9 = sld [smem:[#allocation0]]
  $region70: #{tpu_custom_call.1} parent=0
    _
  %s11 = ssub.s32 1, %s9
  %s12 = scalar_select 0, %s11, %s9
  $region1: #{tpu_custom_call.1} parent=0
    #allocation2 [shape = 'u8[4096]{0}', space=vmem, size = 0x1000, scoped, tag = 'input window, operand 0, single buffered']
    #allocation3 [shape = 's32[1]{0}', space=sflag, size = 0x4, scoped, tag = 'scoped memory for tpu_custom_call.1']
    #allocation4 [shape = 's32[1]{0}', space=sflag, size = 0x4, scoped, tag = 'scoped memory for tpu_custom_call.1']
    #allocation5 [shape = 'u8[16384]{0}', space=vmem, size = 0x4000, scoped, tag = 'input window, operand 1, single buffered']
    #allocation6 [shape = 's32[1]{0}', space=sflag, size = 0x4, scoped, tag = 'scoped memory for tpu_custom_call.1']
    #allocation7 [shape = 'u8[2048]{0}', space=vmem, size = 0x800, scoped, tag = 'input window, operand 2, single buffered']
    #allocation8 [shape = 'u8[32768]{0}', space=vmem, size = 0x8000, scoped, tag = 'input window, operand 3, single buffered']
    #allocation9 [shape = 's32[1]{0}', space=sflag, size = 0x4, scoped, tag = 'scoped memory for tpu_custom_call.1']
    #allocation10 [shape = 'u8[2048]{0}', space=vmem, size = 0x800, scoped, tag = 'input window, operand 4, single buffered']
    #allocation11 [shape = 'u8[65536]{0}', space=vmem, size = 0x10000, scoped, tag = 'input window, operand 5, single buffered']
    #allocation12 [shape = 's32[1]{0}', space=sflag, size = 0x4, scoped, tag = 'scoped memory for tpu_custom_call.1']
    #allocation13 [shape = 'u8[16384]{0}', space=vmem, size = 0x4000, scoped, tag = 'input window, operand 6, single buffered']
    #allocation14 [shape = 'u8[4096]{0}', space=vmem, size = 0x1000, scoped, tag = 'output window, operand 0, single buffered']
    %13 = vsyncpa [#allocation3], 0
    %14 = vsyncpa [#allocation6], 0
    %15 = vsyncpa [#allocation9], 0
    %16 = vsyncpa [#allocation12], 0
    %17 = vsyncpa [#allocation4], 0
    // Predicated region
    $region2: #{tpu_custom_call.1} parent=1 // pred_check
      _
    $region3: #{tpu_custom_call.1} parent=1 // pred_check_branch
      %19 = sbr.rel (0) target = $region5
    $region4: #{tpu_custom_call.1} parent=1 // pred_region
      %21 = vsyncadd [#allocation3], 0
      %s23 = sshll.u32 %s0, 4
      %s24 = int_to_ptr.hbm [resolvable:$true] %s23
      %s25 = sshll.u32 [#allocation2], 4
      %s26 = int_to_ptr.vmem [resolvable:$true] %s25
      %28 = dma.hbm_to_vmem [thread:$0]  %s24, 128, %s26, [#allocation3]
    $region5: #{tpu_custom_call.1} parent=1 // pred_fallthru
      _
    // Predicated region
    $region6: #{tpu_custom_call.1} parent=1 // pred_check
      _
    $region7: #{tpu_custom_call.1} parent=1 // pred_check_branch
      %30 = sbr.rel (0) target = $region9
    $region8: #{tpu_custom_call.1} parent=1 // pred_region
      %32 = vsyncadd [#allocation6], 0
      %s33 = sshll.u32 %s1, 4
      %s34 = int_to_ptr.hbm [resolvable:$true] %s33
      %s35 = sshll.u32 [#allocation5], 4
      %s36 = int_to_ptr.vmem [resolvable:$true] %s35
      %41 = dma.hbm_to_vmem [thread:$0]  %s34, 512, %s36, [#allocation6], 128, 128, 8
    $region9: #{tpu_custom_call.1} parent=1 // pred_fallthru
      _
    // Predicated region
    $region10: #{tpu_custom_call.1} parent=1 // pred_check
      _
    $region11: #{tpu_custom_call.1} parent=1 // pred_check_branch
      %43 = sbr.rel (0) target = $region13
    $region12: #{tpu_custom_call.1} parent=1 // pred_region
      %45 = vsyncadd [#allocation6], 0
      %s47 = sshll.u32 %s2, 4
      %s48 = int_to_ptr.hbm [resolvable:$true] %s47
      %s49 = sshll.u32 [#allocation7], 4
      %s50 = int_to_ptr.vmem [resolvable:$true] %s49
      %52 = dma.hbm_to_vmem [thread:$0]  %s48, 64, %s50, [#allocation6]
    $region13: #{tpu_custom_call.1} parent=1 // pred_fallthru
      _
    // Predicated region
    $region14: #{tpu_custom_call.1} parent=1 // pred_check
      _
    $region15: #{tpu_custom_call.1} parent=1 // pred_check_branch
      %54 = sbr.rel (0) target = $region17
    $region16: #{tpu_custom_call.1} parent=1 // pred_region
      %56 = vsyncadd [#allocation9], 0
      %s57 = sshll.u32 %s3, 4
      %s58 = int_to_ptr.hbm [resolvable:$true] %s57
      %s59 = sshll.u32 [#allocation8], 4
      %s60 = int_to_ptr.vmem [resolvable:$true] %s59
      %65 = dma.hbm_to_vmem [thread:$0]  %s58, 1024, %s60, [#allocation9], 128, 128, 8
    $region17: #{tpu_custom_call.1} parent=1 // pred_fallthru
      _
    // Predicated region
    $region18: #{tpu_custom_call.1} parent=1 // pred_check
      _
    $region19: #{tpu_custom_call.1} parent=1 // pred_check_branch
      %67 = sbr.rel (0) target = $region21
    $region20: #{tpu_custom_call.1} parent=1 // pred_region
      %69 = vsyncadd [#allocation9], 0
      %s71 = sshll.u32 %s4, 4
      %s72 = int_to_ptr.hbm [resolvable:$true] %s71
      %s73 = sshll.u32 [#allocation10], 4
      %s74 = int_to_ptr.vmem [resolvable:$true] %s73
      %76 = dma.hbm_to_vmem [thread:$0]  %s72, 64, %s74, [#allocation9]
    $region21: #{tpu_custom_call.1} parent=1 // pred_fallthru
      _
    // Predicated region
    $region22: #{tpu_custom_call.1} parent=1 // pred_check
      _
    $region23: #{tpu_custom_call.1} parent=1 // pred_check_branch
      %78 = sbr.rel (0) target = $region25
    $region24: #{tpu_custom_call.1} parent=1 // pred_region
      %80 = vsyncadd [#allocation12], 0
      %s81 = sshll.u32 %s5, 4
      %s82 = int_to_ptr.hbm [resolvable:$true] %s81
      %s83 = sshll.u32 [#allocation11], 4
      %s84 = int_to_ptr.vmem [resolvable:$true] %s83
      %89 = dma.hbm_to_vmem [thread:$0]  %s82, 2048, %s84, [#allocation12], 128, 128, 8
    $region25: #{tpu_custom_call.1} parent=1 // pred_fallthru
      _
    // Predicated region
    $region26: #{tpu_custom_call.1} parent=1 // pred_check
      _
    $region27: #{tpu_custom_call.1} parent=1 // pred_check_branch
      %91 = sbr.rel (0) target = $region29
    $region28: #{tpu_custom_call.1} parent=1 // pred_region
      %93 = vsyncadd [#allocation12], 0
      %s94 = sshll.u32 %s6, 4
      %s95 = int_to_ptr.hbm [resolvable:$true] %s94
      %s96 = sshll.u32 [#allocation13], 4
      %s97 = int_to_ptr.vmem [resolvable:$true] %s96
      %102 = dma.hbm_to_vmem [thread:$0]  %s95, 512, %s97, [#allocation12], 128, 128, 8
    $region29: #{tpu_custom_call.1} parent=1 // pred_fallthru
      _
    // Predicated region
    $region30: #{tpu_custom_call.1} parent=1 // pred_check
      _
    $region31: #{tpu_custom_call.1} parent=1 // pred_check_branch
      %104 = sbr.rel (0) target = $region33
    $region32: #{tpu_custom_call.1} parent=1 // pred_region
      _
    $region33: #{tpu_custom_call.1} parent=1 // pred_fallthru
      _
    // Predicated region
    $region34: #{tpu_custom_call.1} parent=1 // pred_check
      _
    $region35: #{tpu_custom_call.1} parent=1 // pred_check_branch
      %106 = sbr.rel (0) target = $region37
    $region36: #{tpu_custom_call.1} parent=1 // pred_region
      %108 = dma.done [#allocation3], 128
    $region37: #{tpu_custom_call.1} parent=1 // pred_fallthru
      _
    // Predicated region
    $region38: #{tpu_custom_call.1} parent=1 // pred_check
      _
    $region39: #{tpu_custom_call.1} parent=1 // pred_check_branch
      %110 = sbr.rel (0) target = $region41
    $region40: #{tpu_custom_call.1} parent=1 // pred_region
      %112 = dma.done [#allocation6], 512
    $region41: #{tpu_custom_call.1} parent=1 // pred_fallthru
      _
    // Predicated region
    $region42: #{tpu_custom_call.1} parent=1 // pred_check
      _
    $region43: #{tpu_custom_call.1} parent=1 // pred_check_branch
      %114 = sbr.rel (0) target = $region45
    $region44: #{tpu_custom_call.1} parent=1 // pred_region
      %116 = dma.done [#allocation6], 64
    $region45: #{tpu_custom_call.1} parent=1 // pred_fallthru
      _
    // Predicated region
    $region46: #{tpu_custom_call.1} parent=1 // pred_check
      _
    $region47: #{tpu_custom_call.1} parent=1 // pred_check_branch
      %118 = sbr.rel (0) target = $region49
    $region48: #{tpu_custom_call.1} parent=1 // pred_region
      %120 = dma.done [#allocation9], 1024
    $region49: #{tpu_custom_call.1} parent=1 // pred_fallthru
      _
    // Predicated region
    $region50: #{tpu_custom_call.1} parent=1 // pred_check
      _
    $region51: #{tpu_custom_call.1} parent=1 // pred_check_branch
      %122 = sbr.rel (0) target = $region53
    $region52: #{tpu_custom_call.1} parent=1 // pred_region
      %124 = dma.done [#allocation9], 64
    $region53: #{tpu_custom_call.1} parent=1 // pred_fallthru
      _
    // Predicated region
    $region54: #{tpu_custom_call.1} parent=1 // pred_check
      _
    $region55: #{tpu_custom_call.1} parent=1 // pred_check_branch
      %126 = sbr.rel (0) target = $region57
    $region56: #{tpu_custom_call.1} parent=1 // pred_region
      %128 = dma.done [#allocation12], 2048
    $region57: #{tpu_custom_call.1} parent=1 // pred_fallthru
      _
    // Predicated region
    $region58: #{tpu_custom_call.1} parent=1 // pred_check
      _
    $region59: #{tpu_custom_call.1} parent=1 // pred_check_branch
      %130 = sbr.rel (0) target = $region61
    $region60: #{tpu_custom_call.1} parent=1 // pred_region
      %132 = dma.done [#allocation12], 512
    $region61: #{tpu_custom_call.1} parent=1 // pred_fallthru
      _
    %v133 = vld [vmem:[#allocation2] sm:$0xff]
    %v134 = vld [vmem:[#allocation5] sm:$0xff]
    %v135 = vld [vmem:[#allocation5 + $0x8] sm:$0xff]
    %v136 = vld [vmem:[#allocation5 + $0x10] sm:$0xff]
    %v137 = vld [vmem:[#allocation5 + $0x18] sm:$0xff]
    %v138 = vld [vmem:[#allocation7] sm:$0x1]
    %v139 = vperm.slane %v138, 0
    %vm140 = vcmask 261120
    %v142 = vsel %vm140, %v133, 0
    %144 = vmatpush.msra.mxu0 0.0
    %145 = vmatpush.msra.mxu0 0.0
    %146 = vmatpush.msra.mxu0 0.0
    %147 = vmatpush.msra.mxu0 0.0
    %148 = vmatpush.msra.mxu0 0.0
    %149 = vmatpush.msra.mxu0 0.0
    %150 = vmatpush.msra.mxu0 0.0
    %151 = vmatpush.msra.mxu0 0.0
    %152 = vmatpush.msra.mxu0 0.0
    %153 = vmatpush.msra.mxu0 0.0
    %154 = vmatpush.msra.mxu0 0.0
    %155 = vmatpush.msra.mxu0 0.0
    %156 = vmatpush.msra.mxu0 %v137
    %157 = vmatpush.msra.mxu0 %v136
    %158 = vmatpush.msra.mxu0 %v135
    %159 = vmatpush.msra.mxu0 %v134
    %160 = vmatmul.f32.gmra.mxu0 %v142
    %v161 = vpop.f32.mrf.mxu0
    %v162 = vadd.f32 %v139, %v161
    %163 = vdwg.mxu0
    %v164 = vld [vmem:[#allocation7 + $0x1] sm:$0x1]
    %v165 = vld [vmem:[#allocation7 + $0x2] sm:$0x1]
    %vm166 = vcmask 523264
    %v167 = vsel %vm166, %v162, 0.0
    %168 = vadd.xlane.f32.xlu0 %v167
    %v169 = vpop.xlane.xlu0 %168
    %v170 = vrcp.pop 64.0
    %v171 = vmul.f32 64.0, %v170
    %v172 = vsub.f32 1.0, %v171
    %v173 = vmul.f32 %v170, %v172
    %v174 = vadd.f32 %v170, %v173
    %vm175 = vweird.f32 %v170
    %v176 = vsel %vm175, %v170, %v174
    %v177 = vmul.f32 %v169, %v176
    %v178 = vsub.f32 %v162, %v177
    %v179 = vmul.f32 %v178, %v178
    %v180 = vsel %vm166, %v179, 0.0
    %181 = vadd.xlane.f32.xlu0 %v180
    %v182 = vpop.xlane.xlu0 %181
    %v183 = vmul.f32 %v182, %v176
    %v184 = vadd.f32 %v183, 1e-05
    %v185 = vrsqrt.pop %v184
    %v186 = vmul.f32 %v185, %v184
    %v187 = vmul.f32 %v186, %v185
    %v188 = vmul.f32 0.5, %v187
    %v189 = vsub.f32 1.5, %v188
    %v190 = vmul.f32 %v185, %v189
    %vm191 = vweird.f32 %v184
    %vm192 = vweird.f32 %v185
    %vm193 = vmor %vm191, %vm192
    %v194 = vsel %vm193, %v185, %v190
    %v195 = vmul.f32 %v178, %v194
    %v196 = vperm.slane %v164, 0
    %v197 = vmul.f32 %v195, %v196
    %v198 = vperm.slane %v165, 0
    %v199 = vadd.f32 %v197, %v198
    %v200 = vmax.f32 %v199, 0.0
    %v201 = vld [vmem:[#allocation8] sm:$0xff]
    %v202 = vld [vmem:[#allocation8 + $0x8] sm:$0xff]
    %v203 = vld [vmem:[#allocation8 + $0x10] sm:$0xff]
    %v204 = vld [vmem:[#allocation8 + $0x18] sm:$0xff]
    %v205 = vld [vmem:[#allocation8 + $0x20] sm:$0xff]
    %v206 = vld [vmem:[#allocation8 + $0x28] sm:$0xff]
    %v207 = vld [vmem:[#allocation8 + $0x30] sm:$0xff]
    %v208 = vld [vmem:[#allocation8 + $0x38] sm:$0xff]
    %v209 = vld [vmem:[#allocation10] sm:$0x1]
    %v210 = vperm.slane %v209, 0
    %v212 = vsel %vm166, %v200, 0
    %214 = vmatpush.msra.mxu0 0.0
    %215 = vmatpush.msra.mxu0 0.0
    %216 = vmatpush.msra.mxu0 0.0
    %217 = vmatpush.msra.mxu0 0.0
    %218 = vmatpush.msra.mxu0 0.0
    %219 = vmatpush.msra.mxu0 0.0
    %220 = vmatpush.msra.mxu0 0.0
    %221 = vmatpush.msra.mxu0 0.0
    %222 = vmatpush.msra.mxu0 %v208
    %223 = vmatpush.msra.mxu0 %v207
    %224 = vmatpush.msra.mxu0 %v206
    %225 = vmatpush.msra.mxu0 %v205
    %226 = vmatpush.msra.mxu0 %v204
    %227 = vmatpush.msra.mxu0 %v203
    %228 = vmatpush.msra.mxu0 %v202
    %229 = vmatpush.msra.mxu0 %v201
    %230 = vmatmul.f32.gmra.mxu0 %v212
    %v231 = vpop.f32.mrf.mxu0
    %v232 = vadd.f32 %v210, %v231
    %233 = vdwg.mxu0
    %v234 = vld [vmem:[#allocation10 + $0x1] sm:$0x1]
    %v235 = vld [vmem:[#allocation10 + $0x2] sm:$0x1]
    %236 = vadd.xlane.f32.xlu0 %v232
    %v237 = vpop.xlane.xlu0 %236
    %v238 = vrcp.pop 128.0
    %v239 = vmul.f32 128.0, %v238
    %v240 = vsub.f32 1.0, %v239
    %v241 = vmul.f32 %v238, %v240
    %v242 = vadd.f32 %v238, %v241
    %vm243 = vweird.f32 %v238
    %v244 = vsel %vm243, %v238, %v242
    %v245 = vmul.f32 %v237, %v244
    %v246 = vsub.f32 %v232, %v245
    %v247 = vmul.f32 %v246, %v246
    %248 = vadd.xlane.f32.xlu0 %v247
    %v249 = vpop.xlane.xlu0 %248
    %v250 = vmul.f32 %v249, %v244
    %v251 = vadd.f32 %v250, 1e-05
    %v252 = vrsqrt.pop %v251
    %v253 = vmul.f32 %v252, %v251
    %v254 = vmul.f32 %v253, %v252
    %v255 = vmul.f32 0.5, %v254
    %v256 = vsub.f32 1.5, %v255
    %v257 = vmul.f32 %v252, %v256
    %vm258 = vweird.f32 %v251
    %vm259 = vweird.f32 %v252
    %vm260 = vmor %vm258, %vm259
    %v261 = vsel %vm260, %v252, %v257
    %v262 = vmul.f32 %v246, %v261
    %v263 = vperm.slane %v234, 0
    %v264 = vmul.f32 %v262, %v263
    %v265 = vperm.slane %v235, 0
    %v266 = vadd.f32 %v264, %v265
    %v267 = vmax.f32 %v266, 0.0
    %v268 = vld [vmem:[#allocation11] sm:$0xff]
    %v269 = vld [vmem:[#allocation11 + $0x8] sm:$0xff]
    %v270 = vld [vmem:[#allocation11 + $0x10] sm:$0xff]
    %v271 = vld [vmem:[#allocation11 + $0x18] sm:$0xff]
    %v272 = vld [vmem:[#allocation11 + $0x20] sm:$0xff]
    %v273 = vld [vmem:[#allocation11 + $0x28] sm:$0xff]
    %v274 = vld [vmem:[#allocation11 + $0x30] sm:$0xff]
    %v275 = vld [vmem:[#allocation11 + $0x38] sm:$0xff]
    %v276 = vld [vmem:[#allocation11 + $0x40] sm:$0xff]
    %v277 = vld [vmem:[#allocation11 + $0x48] sm:$0xff]
    %v278 = vld [vmem:[#allocation11 + $0x50] sm:$0xff]
    %v279 = vld [vmem:[#allocation11 + $0x58] sm:$0xff]
    %v280 = vld [vmem:[#allocation11 + $0x60] sm:$0xff]
    %v281 = vld [vmem:[#allocation11 + $0x68] sm:$0xff]
    %v282 = vld [vmem:[#allocation11 + $0x70] sm:$0xff]
    %v283 = vld [vmem:[#allocation11 + $0x78] sm:$0xff]
    %v284 = vld [vmem:[#allocation13] sm:$0xff]
    %v285 = vld [vmem:[#allocation13 + $0x8] sm:$0xff]
    %v286 = vld [vmem:[#allocation13 + $0x10] sm:$0xff]
    %v287 = vld [vmem:[#allocation13 + $0x18] sm:$0xff]
    %288 = vmatpush.msra.mxu0 0.0
    %289 = vmatpush.msra.mxu0 0.0
    %290 = vmatpush.msra.mxu0 0.0
    %291 = vmatpush.msra.mxu0 0.0
    %292 = vmatpush.msra.mxu0 0.0
    %293 = vmatpush.msra.mxu0 0.0
    %294 = vmatpush.msra.mxu0 0.0
    %295 = vmatpush.msra.mxu0 0.0
    %296 = vmatpush.msra.mxu0 0.0
    %297 = vmatpush.msra.mxu0 0.0
    %298 = vmatpush.msra.mxu0 0.0
    %299 = vmatpush.msra.mxu0 0.0
    %300 = vmatpush.msra.mxu0 %v287
    %301 = vmatpush.msra.mxu0 %v286
    %302 = vmatpush.msra.mxu0 %v285
    %303 = vmatpush.msra.mxu0 %v284
    %304 = vmatmul.f32.gmra.mxu0 %v142
    %v305 = vpop.f32.mrf.mxu0
    %v306 = vadd.f32 0.0, %v305
    %307 = vdwg.mxu0
    %308 = vmatpush.msra.mxu0 %v283
    %309 = vmatpush.msra.mxu0 %v282
    %310 = vmatpush.msra.mxu0 %v281
    %311 = vmatpush.msra.mxu0 %v280
    %312 = vmatpush.msra.mxu0 %v279
    %313 = vmatpush.msra.mxu0 %v278
    %314 = vmatpush.msra.mxu0 %v277
    %315 = vmatpush.msra.mxu0 %v276
    %316 = vmatpush.msra.mxu0 %v275
    %317 = vmatpush.msra.mxu0 %v274
    %318 = vmatpush.msra.mxu0 %v273
    %319 = vmatpush.msra.mxu0 %v272
    %320 = vmatpush.msra.mxu0 %v271
    %321 = vmatpush.msra.mxu0 %v270
    %322 = vmatpush.msra.mxu0 %v269
    %323 = vmatpush.msra.mxu0 %v268
    %324 = vmatmul.f32.gmra.mxu0 %v267
    %v325 = vpop.f32.mrf.mxu0
    %v326 = vadd.f32 %v306, %v325
    %327 = vdwg.mxu0
    %v328 = vld [vmem:[%s7] sm:$0x1]
    %v330 = vperm.slane %v328, 0
    %v332 = vadd.f32 %v326, %v330
    %333 = vst [vmem:[#allocation14] sm:$0xff] %v332
    // Predicated region
    $region62: #{tpu_custom_call.1} parent=1 // pred_check
      _
    $region63: #{tpu_custom_call.1} parent=1 // pred_check_branch
      %335 = sbr.rel (0) target = $region65
    $region64: #{tpu_custom_call.1} parent=1 // pred_region
      %337 = vsyncadd [#allocation4], 0
      %s339 = sshll.u32 [#allocation14], 4
      %s340 = int_to_ptr.vmem [resolvable:$true] %s339
      %s341 = sshll.u32 %s8, 4
      %s342 = int_to_ptr.hbm [resolvable:$true] %s341
      %344 = dma.vmem_to_hbm [thread:$0]  %s340, 128, %s342, [#allocation4]
    $region65: #{tpu_custom_call.1} parent=1 // pred_fallthru
      _
    // Predicated region
    $region66: #{tpu_custom_call.1} parent=1 // pred_check
      _
    $region67: #{tpu_custom_call.1} parent=1 // pred_check_branch
      %346 = sbr.rel (0) target = $region69
    $region68: #{tpu_custom_call.1} parent=1 // pred_region
      %348 = dma.done [#allocation4], 128
    $region69: #{tpu_custom_call.1} parent=1 // pred_fallthru
      _
    %349 = vsyncpa [#allocation3], 1
    %350 = vsyncpa [#allocation6], 1
    %351 = vsyncpa [#allocation9], 1
    %352 = vsyncpa [#allocation12], 1
    %353 = vsyncpa [#allocation4], 1

// kernel: tpu_custom_call.1
$region0: #{tpu_custom_call.1}
  #allocation0 [shape = 'u32[]', space=smem, size = 0x4, offset = 0x4, fixed_abs, tag = 'smem constant byte address 0x4 - core index']
  #allocation1 [shape = 'u32[72,128]{1,0:T(1,128)}', space=vmem, size = 0x9000, scoped, tag = 'internal scratch']
  %s0 = inlined_call_operand.hbm [shape: f32[8,32], index: 0, kind: input, shape index: {}]
  %s1 = inlined_call_operand.hbm [shape: f32[32,64], index: 1, kind: input, shape index: {}]
  %s2 = inlined_call_operand.hbm [shape: f32[3,64], index: 2, kind: input, shape index: {}]
  %s3 = inlined_call_operand.hbm [shape: f32[64,128], index: 3, kind: input, shape index: {}]
  %s4 = inlined_call_operand.hbm [shape: f32[3,128], index: 4, kind: input, shape index: {}]
  %s5 = inlined_call_operand.hbm [shape: f32[128,128], index: 5, kind: input, shape index: {}]
  %s6 = inlined_call_operand.hbm [shape: f32[32,128], index: 6, kind: input, shape index: {}]
  %s7 = inlined_call_operand.vmem [shape: f32[1,128], index: 7, kind: input, shape index: {}]
  %s8 = inlined_call_operand.hbm [shape: f32[8,128], index: 8, kind: output, shape index: {}]
  %s9 = sld [smem:[#allocation0]]
  $region70: #{tpu_custom_call.1} parent=0
    _
  %s11 = ssub.s32 1, %s9
  %s12 = scalar_select 0, %s11, %s9
  $region1: #{tpu_custom_call.1} parent=0
    #allocation2 [shape = 'u8[4096]{0}', space=vmem, size = 0x1000, scoped, tag = 'input window, operand 0, single buffered']
    #allocation3 [shape = 's32[1]{0}', space=sflag, size = 0x4, scoped, tag = 'scoped memory for tpu_custom_call.1']
    #allocation4 [shape = 's32[1]{0}', space=sflag, size = 0x4, scoped, tag = 'scoped memory for tpu_custom_call.1']
    #allocation5 [shape = 'u8[16384]{0}', space=vmem, size = 0x4000, scoped, tag = 'input window, operand 1, single buffered']
    #allocation6 [shape = 's32[1]{0}', space=sflag, size = 0x4, scoped, tag = 'scoped memory for tpu_custom_call.1']
    #allocation7 [shape = 'u8[2048]{0}', space=vmem, size = 0x800, scoped, tag = 'input window, operand 2, single buffered']
    #allocation8 [shape = 'u8[32768]{0}', space=vmem, size = 0x8000, scoped, tag = 'input window, operand 3, single buffered']
    #allocation9 [shape = 's32[1]{0}', space=sflag, size = 0x4, scoped, tag = 'scoped memory for tpu_custom_call.1']
    #allocation10 [shape = 'u8[2048]{0}', space=vmem, size = 0x800, scoped, tag = 'input window, operand 4, single buffered']
    #allocation11 [shape = 'u8[65536]{0}', space=vmem, size = 0x10000, scoped, tag = 'input window, operand 5, single buffered']
    #allocation12 [shape = 's32[1]{0}', space=sflag, size = 0x4, scoped, tag = 'scoped memory for tpu_custom_call.1']
    #allocation13 [shape = 'u8[16384]{0}', space=vmem, size = 0x4000, scoped, tag = 'input window, operand 6, single buffered']
    #allocation14 [shape = 'u8[4096]{0}', space=vmem, size = 0x1000, scoped, tag = 'output window, operand 0, single buffered']
    %13 = vsyncpa [#allocation3], 0
    %14 = vsyncpa [#allocation6], 0
    %15 = vsyncpa [#allocation9], 0
    %16 = vsyncpa [#allocation12], 0
    %17 = vsyncpa [#allocation4], 0
    // Predicated region
    $region2: #{tpu_custom_call.1} parent=1 // pred_check
      _
    $region3: #{tpu_custom_call.1} parent=1 // pred_check_branch
      %19 = sbr.rel (0) target = $region5
    $region4: #{tpu_custom_call.1} parent=1 // pred_region
      %21 = vsyncadd [#allocation3], 0
      %s23 = sshll.u32 %s0, 4
      %s24 = int_to_ptr.hbm [resolvable:$true] %s23
      %s25 = sshll.u32 [#allocation2], 4
      %s26 = int_to_ptr.vmem [resolvable:$true] %s25
      %28 = dma.hbm_to_vmem [thread:$0]  %s24, 128, %s26, [#allocation3]
    $region5: #{tpu_custom_call.1} parent=1 // pred_fallthru
      _
    // Predicated region
    $region6: #{tpu_custom_call.1} parent=1 // pred_check
      _
    $region7: #{tpu_custom_call.1} parent=1 // pred_check_branch
      %30 = sbr.rel (0) target = $region9
    $region8: #{tpu_custom_call.1} parent=1 // pred_region
      %32 = vsyncadd [#allocation6], 0
      %s33 = sshll.u32 %s1, 4
      %s34 = int_to_ptr.hbm [resolvable:$true] %s33
      %s35 = sshll.u32 [#allocation5], 4
      %s36 = int_to_ptr.vmem [resolvable:$true] %s35
      %41 = dma.hbm_to_vmem [thread:$0]  %s34, 512, %s36, [#allocation6], 128, 128, 8
    $region9: #{tpu_custom_call.1} parent=1 // pred_fallthru
      _
    // Predicated region
    $region10: #{tpu_custom_call.1} parent=1 // pred_check
      _
    $region11: #{tpu_custom_call.1} parent=1 // pred_check_branch
      %43 = sbr.rel (0) target = $region13
    $region12: #{tpu_custom_call.1} parent=1 // pred_region
      %45 = vsyncadd [#allocation6], 0
      %s47 = sshll.u32 %s2, 4
      %s48 = int_to_ptr.hbm [resolvable:$true] %s47
      %s49 = sshll.u32 [#allocation7], 4
      %s50 = int_to_ptr.vmem [resolvable:$true] %s49
      %52 = dma.hbm_to_vmem [thread:$0]  %s48, 64, %s50, [#allocation6]
    $region13: #{tpu_custom_call.1} parent=1 // pred_fallthru
      _
    // Predicated region
    $region14: #{tpu_custom_call.1} parent=1 // pred_check
      _
    $region15: #{tpu_custom_call.1} parent=1 // pred_check_branch
      %54 = sbr.rel (0) target = $region17
    $region16: #{tpu_custom_call.1} parent=1 // pred_region
      %56 = vsyncadd [#allocation9], 0
      %s57 = sshll.u32 %s3, 4
      %s58 = int_to_ptr.hbm [resolvable:$true] %s57
      %s59 = sshll.u32 [#allocation8], 4
      %s60 = int_to_ptr.vmem [resolvable:$true] %s59
      %65 = dma.hbm_to_vmem [thread:$0]  %s58, 1024, %s60, [#allocation9], 128, 128, 8
    $region17: #{tpu_custom_call.1} parent=1 // pred_fallthru
      _
    // Predicated region
    $region18: #{tpu_custom_call.1} parent=1 // pred_check
      _
    $region19: #{tpu_custom_call.1} parent=1 // pred_check_branch
      %67 = sbr.rel (0) target = $region21
    $region20: #{tpu_custom_call.1} parent=1 // pred_region
      %69 = vsyncadd [#allocation9], 0
      %s71 = sshll.u32 %s4, 4
      %s72 = int_to_ptr.hbm [resolvable:$true] %s71
      %s73 = sshll.u32 [#allocation10], 4
      %s74 = int_to_ptr.vmem [resolvable:$true] %s73
      %76 = dma.hbm_to_vmem [thread:$0]  %s72, 64, %s74, [#allocation9]
    $region21: #{tpu_custom_call.1} parent=1 // pred_fallthru
      _
    // Predicated region
    $region22: #{tpu_custom_call.1} parent=1 // pred_check
      _
    $region23: #{tpu_custom_call.1} parent=1 // pred_check_branch
      %78 = sbr.rel (0) target = $region25
    $region24: #{tpu_custom_call.1} parent=1 // pred_region
      %80 = vsyncadd [#allocation12], 0
      %s81 = sshll.u32 %s5, 4
      %s82 = int_to_ptr.hbm [resolvable:$true] %s81
      %s83 = sshll.u32 [#allocation11], 4
      %s84 = int_to_ptr.vmem [resolvable:$true] %s83
      %89 = dma.hbm_to_vmem [thread:$0]  %s82, 2048, %s84, [#allocation12], 128, 128, 8
    $region25: #{tpu_custom_call.1} parent=1 // pred_fallthru
      _
    // Predicated region
    $region26: #{tpu_custom_call.1} parent=1 // pred_check
      _
    $region27: #{tpu_custom_call.1} parent=1 // pred_check_branch
      %91 = sbr.rel (0) target = $region29
    $region28: #{tpu_custom_call.1} parent=1 // pred_region
      %93 = vsyncadd [#allocation12], 0
      %s94 = sshll.u32 %s6, 4
      %s95 = int_to_ptr.hbm [resolvable:$true] %s94
      %s96 = sshll.u32 [#allocation13], 4
      %s97 = int_to_ptr.vmem [resolvable:$true] %s96
      %102 = dma.hbm_to_vmem [thread:$0]  %s95, 512, %s97, [#allocation12], 128, 128, 8
    $region29: #{tpu_custom_call.1} parent=1 // pred_fallthru
      _
    // Predicated region
    $region30: #{tpu_custom_call.1} parent=1 // pred_check
      _
    $region31: #{tpu_custom_call.1} parent=1 // pred_check_branch
      %104 = sbr.rel (0) target = $region33
    $region32: #{tpu_custom_call.1} parent=1 // pred_region
      _
    $region33: #{tpu_custom_call.1} parent=1 // pred_fallthru
      _
    // Predicated region
    $region34: #{tpu_custom_call.1} parent=1 // pred_check
      _
    $region35: #{tpu_custom_call.1} parent=1 // pred_check_branch
      %106 = sbr.rel (0) target = $region37
    $region36: #{tpu_custom_call.1} parent=1 // pred_region
      %108 = dma.done [#allocation3], 128
    $region37: #{tpu_custom_call.1} parent=1 // pred_fallthru
      _
    // Predicated region
    $region38: #{tpu_custom_call.1} parent=1 // pred_check
      _
    $region39: #{tpu_custom_call.1} parent=1 // pred_check_branch
      %110 = sbr.rel (0) target = $region41
    $region40: #{tpu_custom_call.1} parent=1 // pred_region
      %112 = dma.done [#allocation6], 512
    $region41: #{tpu_custom_call.1} parent=1 // pred_fallthru
      _
    // Predicated region
    $region42: #{tpu_custom_call.1} parent=1 // pred_check
      _
    $region43: #{tpu_custom_call.1} parent=1 // pred_check_branch
      %114 = sbr.rel (0) target = $region45
    $region44: #{tpu_custom_call.1} parent=1 // pred_region
      %116 = dma.done [#allocation6], 64
    $region45: #{tpu_custom_call.1} parent=1 // pred_fallthru
      _
    // Predicated region
    $region46: #{tpu_custom_call.1} parent=1 // pred_check
      _
    $region47: #{tpu_custom_call.1} parent=1 // pred_check_branch
      %118 = sbr.rel (0) target = $region49
    $region48: #{tpu_custom_call.1} parent=1 // pred_region
      %120 = dma.done [#allocation9], 1024
    $region49: #{tpu_custom_call.1} parent=1 // pred_fallthru
      _
    // Predicated region
    $region50: #{tpu_custom_call.1} parent=1 // pred_check
      _
    $region51: #{tpu_custom_call.1} parent=1 // pred_check_branch
      %122 = sbr.rel (0) target = $region53
    $region52: #{tpu_custom_call.1} parent=1 // pred_region
      %124 = dma.done [#allocation9], 64
    $region53: #{tpu_custom_call.1} parent=1 // pred_fallthru
      _
    // Predicated region
    $region54: #{tpu_custom_call.1} parent=1 // pred_check
      _
    $region55: #{tpu_custom_call.1} parent=1 // pred_check_branch
      %126 = sbr.rel (0) target = $region57
    $region56: #{tpu_custom_call.1} parent=1 // pred_region
      %128 = dma.done [#allocation12], 2048
    $region57: #{tpu_custom_call.1} parent=1 // pred_fallthru
      _
    // Predicated region
    $region58: #{tpu_custom_call.1} parent=1 // pred_check
      _
    $region59: #{tpu_custom_call.1} parent=1 // pred_check_branch
      %130 = sbr.rel (0) target = $region61
    $region60: #{tpu_custom_call.1} parent=1 // pred_region
      %132 = dma.done [#allocation12], 512
    $region61: #{tpu_custom_call.1} parent=1 // pred_fallthru
      _
    %v133 = vld [vmem:[#allocation2] sm:$0xff]
    %v134 = vld [vmem:[#allocation5] sm:$0xff]
    %v135 = vld [vmem:[#allocation5 + $0x8] sm:$0xff]
    %v136 = vld [vmem:[#allocation5 + $0x10] sm:$0xff]
    %v137 = vld [vmem:[#allocation5 + $0x18] sm:$0xff]
    %v138 = vld [vmem:[#allocation7] sm:$0x1]
    %v139 = vperm.slane %v138, 0
    %vm140 = vcmask 261120
    %v142 = vsel %vm140, %v133, 0
    %144 = vmatpush.msra.mxu0 0.0
    %145 = vmatpush.msra.mxu0 0.0
    %146 = vmatpush.msra.mxu0 0.0
    %147 = vmatpush.msra.mxu0 0.0
    %148 = vmatpush.msra.mxu0 0.0
    %149 = vmatpush.msra.mxu0 0.0
    %150 = vmatpush.msra.mxu0 0.0
    %151 = vmatpush.msra.mxu0 0.0
    %152 = vmatpush.msra.mxu0 0.0
    %153 = vmatpush.msra.mxu0 0.0
    %154 = vmatpush.msra.mxu0 0.0
    %155 = vmatpush.msra.mxu0 0.0
    %156 = vmatpush.msra.mxu0 %v137
    %157 = vmatpush.msra.mxu0 %v136
    %158 = vmatpush.msra.mxu0 %v135
    %159 = vmatpush.msra.mxu0 %v134
    %160 = vmatmul.f32.gmra.mxu0 %v142
    %v161 = vpop.f32.mrf.mxu0
    %v162 = vadd.f32 %v139, %v161
    %163 = vdwg.mxu0
    %v164 = vld [vmem:[#allocation7 + $0x1] sm:$0x1]
    %v165 = vld [vmem:[#allocation7 + $0x2] sm:$0x1]
    %vm166 = vcmask 523264
    %v167 = vsel %vm166, %v162, 0.0
    %168 = vadd.xlane.f32.xlu0 %v167
    %v169 = vpop.xlane.xlu0 %168
    %v170 = vrcp.pop 64.0
    %v171 = vmul.f32 64.0, %v170
    %v172 = vsub.f32 1.0, %v171
    %v173 = vmul.f32 %v170, %v172
    %v174 = vadd.f32 %v170, %v173
    %vm175 = vweird.f32 %v170
    %v176 = vsel %vm175, %v170, %v174
    %v177 = vmul.f32 %v169, %v176
    %v178 = vsub.f32 %v162, %v177
    %v179 = vmul.f32 %v178, %v178
    %v180 = vsel %vm166, %v179, 0.0
    %181 = vadd.xlane.f32.xlu0 %v180
    %v182 = vpop.xlane.xlu0 %181
    %v183 = vmul.f32 %v182, %v176
    %v184 = vadd.f32 %v183, 1e-05
    %v185 = vrsqrt.pop %v184
    %v186 = vmul.f32 %v185, %v184
    %v187 = vmul.f32 %v186, %v185
    %v188 = vmul.f32 0.5, %v187
    %v189 = vsub.f32 1.5, %v188
    %v190 = vmul.f32 %v185, %v189
    %vm191 = vweird.f32 %v184
    %vm192 = vweird.f32 %v185
    %vm193 = vmor %vm191, %vm192
    %v194 = vsel %vm193, %v185, %v190
    %v195 = vmul.f32 %v178, %v194
    %v196 = vperm.slane %v164, 0
    %v197 = vmul.f32 %v195, %v196
    %v198 = vperm.slane %v165, 0
    %v199 = vadd.f32 %v197, %v198
    %v200 = vmax.f32 %v199, 0.0
    %v201 = vld [vmem:[#allocation8] sm:$0xff]
    %v202 = vld [vmem:[#allocation8 + $0x8] sm:$0xff]
    %v203 = vld [vmem:[#allocation8 + $0x10] sm:$0xff]
    %v204 = vld [vmem:[#allocation8 + $0x18] sm:$0xff]
    %v205 = vld [vmem:[#allocation8 + $0x20] sm:$0xff]
    %v206 = vld [vmem:[#allocation8 + $0x28] sm:$0xff]
    %v207 = vld [vmem:[#allocation8 + $0x30] sm:$0xff]
    %v208 = vld [vmem:[#allocation8 + $0x38] sm:$0xff]
    %v209 = vld [vmem:[#allocation10] sm:$0x1]
    %v210 = vperm.slane %v209, 0
    %v212 = vsel %vm166, %v200, 0
    %214 = vmatpush.msra.mxu0 0.0
    %215 = vmatpush.msra.mxu0 0.0
    %216 = vmatpush.msra.mxu0 0.0
    %217 = vmatpush.msra.mxu0 0.0
    %218 = vmatpush.msra.mxu0 0.0
    %219 = vmatpush.msra.mxu0 0.0
    %220 = vmatpush.msra.mxu0 0.0
    %221 = vmatpush.msra.mxu0 0.0
    %222 = vmatpush.msra.mxu0 %v208
    %223 = vmatpush.msra.mxu0 %v207
    %224 = vmatpush.msra.mxu0 %v206
    %225 = vmatpush.msra.mxu0 %v205
    %226 = vmatpush.msra.mxu0 %v204
    %227 = vmatpush.msra.mxu0 %v203
    %228 = vmatpush.msra.mxu0 %v202
    %229 = vmatpush.msra.mxu0 %v201
    %230 = vmatmul.f32.gmra.mxu0 %v212
    %v231 = vpop.f32.mrf.mxu0
    %v232 = vadd.f32 %v210, %v231
    %233 = vdwg.mxu0
    %v234 = vld [vmem:[#allocation10 + $0x1] sm:$0x1]
    %v235 = vld [vmem:[#allocation10 + $0x2] sm:$0x1]
    %236 = vadd.xlane.f32.xlu0 %v232
    %v237 = vpop.xlane.xlu0 %236
    %v238 = vrcp.pop 128.0
    %v239 = vmul.f32 128.0, %v238
    %v240 = vsub.f32 1.0, %v239
    %v241 = vmul.f32 %v238, %v240
    %v242 = vadd.f32 %v238, %v241
    %vm243 = vweird.f32 %v238
    %v244 = vsel %vm243, %v238, %v242
    %v245 = vmul.f32 %v237, %v244
    %v246 = vsub.f32 %v232, %v245
    %v247 = vmul.f32 %v246, %v246
    %248 = vadd.xlane.f32.xlu0 %v247
    %v249 = vpop.xlane.xlu0 %248
    %v250 = vmul.f32 %v249, %v244
    %v251 = vadd.f32 %v250, 1e-05
    %v252 = vrsqrt.pop %v251
    %v253 = vmul.f32 %v252, %v251
    %v254 = vmul.f32 %v253, %v252
    %v255 = vmul.f32 0.5, %v254
    %v256 = vsub.f32 1.5, %v255
    %v257 = vmul.f32 %v252, %v256
    %vm258 = vweird.f32 %v251
    %vm259 = vweird.f32 %v252
    %vm260 = vmor %vm258, %vm259
    %v261 = vsel %vm260, %v252, %v257
    %v262 = vmul.f32 %v246, %v261
    %v263 = vperm.slane %v234, 0
    %v264 = vmul.f32 %v262, %v263
    %v265 = vperm.slane %v235, 0
    %v266 = vadd.f32 %v264, %v265
    %v267 = vmax.f32 %v266, 0.0
    %v268 = vld [vmem:[#allocation11] sm:$0xff]
    %v269 = vld [vmem:[#allocation11 + $0x8] sm:$0xff]
    %v270 = vld [vmem:[#allocation11 + $0x10] sm:$0xff]
    %v271 = vld [vmem:[#allocation11 + $0x18] sm:$0xff]
    %v272 = vld [vmem:[#allocation11 + $0x20] sm:$0xff]
    %v273 = vld [vmem:[#allocation11 + $0x28] sm:$0xff]
    %v274 = vld [vmem:[#allocation11 + $0x30] sm:$0xff]
    %v275 = vld [vmem:[#allocation11 + $0x38] sm:$0xff]
    %v276 = vld [vmem:[#allocation11 + $0x40] sm:$0xff]
    %v277 = vld [vmem:[#allocation11 + $0x48] sm:$0xff]
    %v278 = vld [vmem:[#allocation11 + $0x50] sm:$0xff]
    %v279 = vld [vmem:[#allocation11 + $0x58] sm:$0xff]
    %v280 = vld [vmem:[#allocation11 + $0x60] sm:$0xff]
    %v281 = vld [vmem:[#allocation11 + $0x68] sm:$0xff]
    %v282 = vld [vmem:[#allocation11 + $0x70] sm:$0xff]
    %v283 = vld [vmem:[#allocation11 + $0x78] sm:$0xff]
    %v284 = vld [vmem:[#allocation13] sm:$0xff]
    %v285 = vld [vmem:[#allocation13 + $0x8] sm:$0xff]
    %v286 = vld [vmem:[#allocation13 + $0x10] sm:$0xff]
    %v287 = vld [vmem:[#allocation13 + $0x18] sm:$0xff]
    %288 = vmatpush.msra.mxu0 0.0
    %289 = vmatpush.msra.mxu0 0.0
    %290 = vmatpush.msra.mxu0 0.0
    %291 = vmatpush.msra.mxu0 0.0
    %292 = vmatpush.msra.mxu0 0.0
    %293 = vmatpush.msra.mxu0 0.0
    %294 = vmatpush.msra.mxu0 0.0
    %295 = vmatpush.msra.mxu0 0.0
    %296 = vmatpush.msra.mxu0 0.0
    %297 = vmatpush.msra.mxu0 0.0
    %298 = vmatpush.msra.mxu0 0.0
    %299 = vmatpush.msra.mxu0 0.0
    %300 = vmatpush.msra.mxu0 %v287
    %301 = vmatpush.msra.mxu0 %v286
    %302 = vmatpush.msra.mxu0 %v285
    %303 = vmatpush.msra.mxu0 %v284
    %304 = vmatmul.f32.gmra.mxu0 %v142
    %v305 = vpop.f32.mrf.mxu0
    %v306 = vadd.f32 0.0, %v305
    %307 = vdwg.mxu0
    %308 = vmatpush.msra.mxu0 %v283
    %309 = vmatpush.msra.mxu0 %v282
    %310 = vmatpush.msra.mxu0 %v281
    %311 = vmatpush.msra.mxu0 %v280
    %312 = vmatpush.msra.mxu0 %v279
    %313 = vmatpush.msra.mxu0 %v278
    %314 = vmatpush.msra.mxu0 %v277
    %315 = vmatpush.msra.mxu0 %v276
    %316 = vmatpush.msra.mxu0 %v275
    %317 = vmatpush.msra.mxu0 %v274
    %318 = vmatpush.msra.mxu0 %v273
    %319 = vmatpush.msra.mxu0 %v272
    %320 = vmatpush.msra.mxu0 %v271
    %321 = vmatpush.msra.mxu0 %v270
    %322 = vmatpush.msra.mxu0 %v269
    %323 = vmatpush.msra.mxu0 %v268
    %324 = vmatmul.f32.gmra.mxu0 %v267
    %v325 = vpop.f32.mrf.mxu0
    %v326 = vadd.f32 %v306, %v325
    %327 = vdwg.mxu0
    %v328 = vld [vmem:[%s7] sm:$0x1]
    %v330 = vperm.slane %v328, 0
    %v332 = vadd.f32 %v326, %v330
    %333 = vst [vmem:[#allocation14] sm:$0xff] %v332
    // Predicated region
    $region62: #{tpu_custom_call.1} parent=1 // pred_check
      _
    $region63: #{tpu_custom_call.1} parent=1 // pred_check_branch
      %335 = sbr.rel (0) target = $region65
    $region64: #{tpu_custom_call.1} parent=1 // pred_region
      %337 = vsyncadd [#allocation4], 0
      %s339 = sshll.u32 [#allocation14], 4
      %s340 = int_to_ptr.vmem [resolvable:$true] %s339
      %s341 = sshll.u32 %s8, 4
      %s342 = int_to_ptr.hbm [resolvable:$true] %s341
      %344 = dma.vmem_to_hbm [thread:$0]  %s340, 128, %s342, [#allocation4]
    $region65: #{tpu_custom_call.1} parent=1 // pred_fallthru
      _
    // Predicated region
    $region66: #{tpu_custom_call.1} parent=1 // pred_check
      _
    $region67: #{tpu_custom_call.1} parent=1 // pred_check_branch
      %346 = sbr.rel (0) target = $region69
    $region68: #{tpu_custom_call.1} parent=1 // pred_region
      %348 = dma.done [#allocation4], 128
    $region69: #{tpu_custom_call.1} parent=1 // pred_fallthru
      _
    %349 = vsyncpa [#allocation3], 1
    %350 = vsyncpa [#allocation6], 1
    %351 = vsyncpa [#allocation9], 1
    %352 = vsyncpa [#allocation12], 1
    %353 = vsyncpa [#allocation4], 1

</llo_original>
